<compile_context>
chip_gen: v6e
topology: v6e:2x2x1
jax: 0.10.0
libtpu: 0.0.40
codegen_flags: <defaults>
</compile_context>

<pallas_src>
import jax
import jax.numpy as jnp
from jax.experimental import pallas as pl
from jax.experimental.pallas import tpu as pltpu


def _spotlight_kernel(q_ref, s_ref, p_ref, reconst_ref, ilastik_ref):
    # Sigmoid of the (constrained) proportion matrix in f32 (EUP), then cast
    # the MXU operand to bf16. Accumulation stays in f32.
    sig_p = jax.nn.sigmoid(p_ref[...].astype(jnp.float32)).astype(jnp.bfloat16)

    # Fused LHS: [Q; S] -> (M + K, T). Both row counts are multiples of the
    # bf16 sublane tile, so the concat is tile-aligned.
    lhs = jnp.concatenate(
        [q_ref[...].astype(jnp.bfloat16), s_ref[...].astype(jnp.bfloat16)],
        axis=0,
    )

    # Single MXU matmul for both products, f32 accumulation.
    fused = jnp.dot(lhs, sig_p, preferred_element_type=jnp.float32)

    m = reconst_ref.shape[0]
    reconst_ref[...] = fused[:m]
    ilastik_ref[...] = fused[m:]


def spotlight_forward(Q, S, P):
    """Q: [M, T], S: [K, T], P: [T, N] -> (reconst [M, N], ilastik [K, N])."""
    M, T = Q.shape
    K, T2 = S.shape
    T3, N = P.shape
    assert T == T2 == T3

    out_shape = (
        jax.ShapeDtypeStruct((M, N), jnp.float32),
        jax.ShapeDtypeStruct((K, N), jnp.float32),
    )

    flops = 2 * (M + K) * T * N
    transcendentals = T * N  # one exp per element of P (sigmoid)
    bytes_accessed = 4 * (M * T + K * T + T * N + (M + K) * N)

    vmem = pltpu.MemorySpace.VMEM
    return pl.pallas_call(
        _spotlight_kernel,
        out_shape=out_shape,
        # No grid -> whole arrays resident in VMEM, no pipelining machinery.
        in_specs=[
            pl.BlockSpec(memory_space=vmem),
            pl.BlockSpec(memory_space=vmem),
            pl.BlockSpec(memory_space=vmem),
        ],
        out_specs=(
            pl.BlockSpec(memory_space=vmem),
            pl.BlockSpec(memory_space=vmem),
        ),
        cost_estimate=pl.CostEstimate(
            flops=flops,
            transcendentals=transcendentals,
            bytes_accessed=bytes_accessed,
        ),
    )(Q, S, P)


def spotlight_reference_f32(Q, S, P):
    """Exact PyTorch semantics (all-f32 math)."""
    sig_p = jax.nn.sigmoid(P.astype(jnp.float32))
    return (
        jnp.matmul(Q.astype(jnp.float32), sig_p),
        jnp.matmul(S.astype(jnp.float32), sig_p),
    )


def spotlight_reference_bf16(Q, S, P):
    """Reference matching the kernel's bf16-operand / f32-accumulate math."""
    sig_p = jax.nn.sigmoid(P.astype(jnp.float32)).astype(jnp.bfloat16)
    q = Q.astype(jnp.bfloat16)
    s = S.astype(jnp.bfloat16)
    return (
        jnp.dot(q, sig_p, preferred_element_type=jnp.float32),
        jnp.dot(s, sig_p, preferred_element_type=jnp.float32),
    )


if __name__ == "__main__":
    # Module sizing (synthetic, deterministic):
    n_types = 16    # T
    n_spots = 128   # N
    n_genes = 64    # M (rows of Q)
    n_pixels = 32   # K (rows of S)

    key = jax.random.PRNGKey(0)
    kq, ks, kp = jax.random.split(key, 3)

    Q = jax.random.normal(kq, (n_genes, n_types), dtype=jnp.float32)
    S = jax.random.normal(ks, (n_pixels, n_types), dtype=jnp.float32)
    # P ~ U[0,1), matching torch.rand(n_types, n_spots) in __init__.
    P = jax.random.uniform(kp, (n_types, n_spots), dtype=jnp.float32)

    reconst, ilastik = spotlight_forward(Q, S, P)
    jax.block_until_ready((reconst, ilastik))

    # Tight check against a reference using the same bf16-operand math.
    ref_r_bf, ref_i_bf = spotlight_reference_bf16(Q, S, P)
    assert jnp.allclose(reconst, ref_r_bf, atol=1e-4, rtol=1e-4)
    assert jnp.allclose(ilastik, ref_i_bf, atol=1e-4, rtol=1e-4)

    # Looser sanity check against the exact f32 (PyTorch) semantics.
    ref_r_f32, ref_i_f32 = spotlight_reference_f32(Q, S, P)
    assert jnp.allclose(reconst, ref_r_f32, atol=5e-2, rtol=5e-2)
    assert jnp.allclose(ilastik, ref_i_f32, atol=5e-2, rtol=5e-2)

    print("KERNEL_OK")
</pallas_src>

<mosaic_0001>
module attributes {stable_mosaic.version = 11 : i64} {
  func.func @_spotlight_kernel(%arg0: memref<64x16xf32, #tpu.memory_space<vmem>>, %arg1: memref<32x16xf32, #tpu.memory_space<vmem>>, %arg2: memref<16x128xf32, #tpu.memory_space<vmem>>, %arg3: memref<64x128xf32, #tpu.memory_space<vmem>>, %arg4: memref<32x128xf32, #tpu.memory_space<vmem>>) attributes {dimension_semantics = [], scalar_prefetch = 0 : i64, scratch_operands = 0 : i64, tpu.core_type = #tpu.core_type<tc>} {
    %c0 = arith.constant 0 : index
    %c0_0 = arith.constant 0 : index
    %0 = vector.load %arg2[%c0, %c0_0] : memref<16x128xf32, #tpu.memory_space<vmem>>, vector<16x128xf32>
    %1 = arith.negf %0 : vector<16x128xf32>
    %2 = math.exp %1 : vector<16x128xf32>
    %cst = arith.constant 1.000000e+00 : f32
    %3 = vector.broadcast %cst : f32 to vector<16x128xf32>
    %4 = arith.addf %3, %2 : vector<16x128xf32>
    %5 = arith.divf %3, %4 : vector<16x128xf32>
    %6 = arith.truncf %5 : vector<16x128xf32> to vector<16x128xbf16>
    %c0_1 = arith.constant 0 : index
    %c0_2 = arith.constant 0 : index
    %7 = vector.load %arg0[%c0_1, %c0_2] : memref<64x16xf32, #tpu.memory_space<vmem>>, vector<64x16xf32>
    %8 = arith.truncf %7 : vector<64x16xf32> to vector<64x16xbf16>
    %c0_3 = arith.constant 0 : index
    %c0_4 = arith.constant 0 : index
    %9 = vector.load %arg1[%c0_3, %c0_4] : memref<32x16xf32, #tpu.memory_space<vmem>>, vector<32x16xf32>
    %10 = arith.truncf %9 : vector<32x16xf32> to vector<32x16xbf16>
    %11 = tpu.concatenate %8, %10 in 0 : vector<64x16xbf16>, vector<32x16xbf16> -> vector<96x16xbf16>
    %cst_5 = arith.constant dense<0.000000e+00> : vector<96x128xf32>
    %12 = tpu.matmul %11, %6, %cst_5 {dimension_numbers = #tpu.dot_dimension_numbers<[1], [0], [0], [1], [0, 0, 1, 1], [], []>} : vector<96x16xbf16>, vector<16x128xbf16>, vector<96x128xf32> -> vector<96x128xf32>
    %13 = vector.extract_strided_slice %12 {offsets = [0, 0], sizes = [64, 128], strides = [1, 1]} : vector<96x128xf32> to vector<64x128xf32>
    %c0_6 = arith.constant 0 : index
    %c0_7 = arith.constant 0 : index
    %14 = vector.load %arg3[%c0_6, %c0_7] : memref<64x128xf32, #tpu.memory_space<vmem>>, vector<64x128xf32>
    tpu.vector_store %arg3[%c0_6, %c0_7], %13 {strides = array<i32>} : memref<64x128xf32, #tpu.memory_space<vmem>>, vector<64x128xf32>,
    %15 = vector.extract_strided_slice %12 {offsets = [64, 0], sizes = [32, 128], strides = [1, 1]} : vector<96x128xf32> to vector<32x128xf32>
    %c0_8 = arith.constant 0 : index
    %c0_9 = arith.constant 0 : index
    %16 = vector.load %arg4[%c0_8, %c0_9] : memref<32x128xf32, #tpu.memory_space<vmem>>, vector<32x128xf32>
    tpu.vector_store %arg4[%c0_8, %c0_9], %15 {strides = array<i32>} : memref<32x128xf32, #tpu.memory_space<vmem>>, vector<32x128xf32>,
    return
  }
}

</mosaic_0001>

<llo_original>
// kernel: tpu_custom_call.1
$region0: #{tpu_custom_call.1}
  #allocation0 [shape = 'u32[]', space=smem, size = 0x4, offset = 0x4, fixed_abs, tag = 'smem constant byte address 0x4 - core index']
  #allocation1 [shape = 'u32[144,128]{1,0:T(1,128)}', space=vmem, size = 0x12000, scoped, tag = 'internal scratch']
  %s0 = inlined_call_operand.vmem [shape: f32[64,16], index: 0, kind: input, shape index: {}]
  %s1 = inlined_call_operand.vmem [shape: f32[32,16], index: 1, kind: input, shape index: {}]
  %s2 = inlined_call_operand.vmem [shape: f32[16,128], index: 2, kind: input, shape index: {}]
  %s3 = inlined_call_operand.hbm [shape: f32[64,128], index: 3, kind: output, shape index: {0}]
  %s4 = inlined_call_operand.hbm [shape: f32[32,128], index: 4, kind: output, shape index: {1}]
  %5 = xla_tuple %s3, %s4
  %s6 = sld [smem:[#allocation0]]
  $region30: #{tpu_custom_call.1} parent=0
    _
  %s8 = ssub.s32 1, %s6
  %s9 = scalar_select 0, %s8, %s6
  $region1: #{tpu_custom_call.1} parent=0
    #allocation2 [shape = 'u8[32768]{0}', space=vmem, size = 0x8000, scoped, tag = 'output window, operand 0, single buffered']
    #allocation3 [shape = 's32[1]{0}', space=sflag, size = 0x4, scoped, tag = 'scoped memory for tpu_custom_call.1']
    #allocation4 [shape = 'u8[16384]{0}', space=vmem, size = 0x4000, scoped, tag = 'output window, operand 1, single buffered']
    #allocation5 [shape = 's32[1]{0}', space=sflag, size = 0x4, scoped, tag = 'scoped memory for tpu_custom_call.1']
    %10 = vsyncpa [#allocation3], 0
    %11 = vsyncpa [#allocation5], 0
    // Predicated region
    $region2: #{tpu_custom_call.1} parent=1 // pred_check
      _
    $region3: #{tpu_custom_call.1} parent=1 // pred_check_branch
      %13 = sbr.rel (0) target = $region5
    $region4: #{tpu_custom_call.1} parent=1 // pred_region
      _
    $region5: #{tpu_custom_call.1} parent=1 // pred_fallthru
      _
    // Predicated region
    $region6: #{tpu_custom_call.1} parent=1 // pred_check
      _
    $region7: #{tpu_custom_call.1} parent=1 // pred_check_branch
      %15 = sbr.rel (0) target = $region9
    $region8: #{tpu_custom_call.1} parent=1 // pred_region
      _
    $region9: #{tpu_custom_call.1} parent=1 // pred_fallthru
      _
    // Predicated region
    $region10: #{tpu_custom_call.1} parent=1 // pred_check
      _
    $region11: #{tpu_custom_call.1} parent=1 // pred_check_branch
      %17 = sbr.rel (0) target = $region13
    $region12: #{tpu_custom_call.1} parent=1 // pred_region
      _
    $region13: #{tpu_custom_call.1} parent=1 // pred_fallthru
      _
    %v19 = vld [vmem:[%s2] sm:$0xff]
    %v20 = vld [vmem:[%s2 + $0x8] sm:$0xff]
    %v21 = vxor.u32 %v19, 2147483648
    %v22 = vxor.u32 %v20, 2147483648
    %v23 = vmul.f32 %v21, 1.442695
    %v24 = vpow.pop %v23
    %v25 = vmul.f32 %v22, 1.442695
    %v26 = vpow.pop %v25
    %v27 = vadd.f32 %v24, 1.0
    %v28 = vadd.f32 %v26, 1.0
    %v29 = vrcp.pop %v27
    %v30 = vmul.f32 1.0, %v29
    %v31 = vrcp.pop %v28
    %v32 = vmul.f32 1.0, %v31
    %v33 = vpack.c.bf16 %v32, %v30
    %v34 = vld [vmem:[%s0] sm:$0xff]
    %v35 = vld [vmem:[%s0 + $0x8] sm:$0xff]
    %v36 = vld [vmem:[%s0 + $0x10] sm:$0xff]
    %v37 = vld [vmem:[%s0 + $0x18] sm:$0xff]
    %v38 = vld [vmem:[%s0 + $0x20] sm:$0xff]
    %v39 = vld [vmem:[%s0 + $0x28] sm:$0xff]
    %v40 = vld [vmem:[%s0 + $0x30] sm:$0xff]
    %v41 = vld [vmem:[%s0 + $0x38] sm:$0xff]
    %v42 = vpack.c.bf16 %v35, %v34
    %v43 = vpack.c.bf16 %v37, %v36
    %v44 = vpack.c.bf16 %v39, %v38
    %v45 = vpack.c.bf16 %v41, %v40
    %v46 = vld [vmem:[%s1] sm:$0xff]
    %v47 = vld [vmem:[%s1 + $0x8] sm:$0xff]
    %v48 = vld [vmem:[%s1 + $0x10] sm:$0xff]
    %v49 = vld [vmem:[%s1 + $0x18] sm:$0xff]
    %v50 = vpack.c.bf16 %v47, %v46
    %v51 = vpack.c.bf16 %v49, %v48
    %vm52 = vcmask 130048
    %v54 = vsel %vm52, %v42, 0
    %v57 = vsel %vm52, %v43, 0
    %v60 = vsel %vm52, %v44, 0
    %v63 = vsel %vm52, %v45, 0
    %v66 = vsel %vm52, %v50, 0
    %v69 = vsel %vm52, %v51, 0
    %71 = vmatprep.subr.bf16.mxu0 0
    %72 = vmatpush1.bf16.msra.mxu0 0
    %73 = vmatprep.subr.bf16.mxu0 0
    %74 = vmatpush1.bf16.msra.mxu0 0
    %75 = vmatprep.subr.bf16.mxu0 0
    %76 = vmatpush1.bf16.msra.mxu0 0
    %77 = vmatprep.subr.bf16.mxu0 0
    %78 = vmatpush1.bf16.msra.mxu0 0
    %79 = vmatprep.subr.bf16.mxu0 0
    %80 = vmatpush1.bf16.msra.mxu0 0
    %81 = vmatprep.subr.bf16.mxu0 0
    %82 = vmatpush1.bf16.msra.mxu0 0
    %83 = vmatprep.subr.bf16.mxu0 0
    %84 = vmatpush1.bf16.msra.mxu0 0
    %85 = vmatprep.subr.bf16.mxu0 0
    %86 = vmatpush1.bf16.msra.mxu0 %v33
    %87 = vmatprep.subr.bf16.mxu0 0
    %88 = vmatpush2.bf16.msra.mxu0 0
    %89 = vmatprep.subr.bf16.mxu0 0
    %90 = vmatpush2.bf16.msra.mxu0 0
    %91 = vmatprep.subr.bf16.mxu0 0
    %92 = vmatpush2.bf16.msra.mxu0 0
    %93 = vmatprep.subr.bf16.mxu0 0
    %94 = vmatpush2.bf16.msra.mxu0 0
    %95 = vmatprep.subr.bf16.mxu0 0
    %96 = vmatpush2.bf16.msra.mxu0 0
    %97 = vmatprep.subr.bf16.mxu0 0
    %98 = vmatpush2.bf16.msra.mxu0 0
    %99 = vmatprep.subr.bf16.mxu0 0
    %100 = vmatpush2.bf16.msra.mxu0 0
    %101 = vmatprep.subr.bf16.mxu0 0
    %102 = vmatpush2.bf16.msra.mxu0 0
    %103 = vmatprep.mubr.bf16.mxu0 0
    %104 = vmatmul.mubr.bf16.gmra.mxu0 %v54
    %v105 = vpop.f32.mrf.mxu0
    %v106 = vadd.f32 0.0, %v105
    %v107 = vpop.f32.mrf.mxu0
    %v108 = vpop.f32.mrf.mxu0
    %v109 = vadd.f32 0.0, %v108
    %v110 = vpop.f32.mrf.mxu0
    %111 = vmatprep.mubr.bf16.mxu0 0
    %112 = vmatmul.mubr.bf16.gmra.mxu0 %v57
    %v113 = vpop.f32.mrf.mxu0
    %v114 = vadd.f32 0.0, %v113
    %v115 = vpop.f32.mrf.mxu0
    %v116 = vpop.f32.mrf.mxu0
    %v117 = vadd.f32 0.0, %v116
    %v118 = vpop.f32.mrf.mxu0
    %119 = vmatprep.mubr.bf16.mxu0 0
    %120 = vmatmul.mubr.bf16.gmra.mxu0 %v60
    %v121 = vpop.f32.mrf.mxu0
    %v122 = vadd.f32 0.0, %v121
    %v123 = vpop.f32.mrf.mxu0
    %v124 = vpop.f32.mrf.mxu0
    %v125 = vadd.f32 0.0, %v124
    %v126 = vpop.f32.mrf.mxu0
    %127 = vmatprep.mubr.bf16.mxu0 0
    %128 = vmatmul.mubr.bf16.gmra.mxu0 %v63
    %v129 = vpop.f32.mrf.mxu0
    %v130 = vadd.f32 0.0, %v129
    %v131 = vpop.f32.mrf.mxu0
    %v132 = vpop.f32.mrf.mxu0
    %v133 = vadd.f32 0.0, %v132
    %v134 = vpop.f32.mrf.mxu0
    %135 = vmatprep.mubr.bf16.mxu0 0
    %136 = vmatmul.mubr.bf16.gmra.mxu0 %v66
    %v137 = vpop.f32.mrf.mxu0
    %v138 = vadd.f32 0.0, %v137
    %v139 = vpop.f32.mrf.mxu0
    %v140 = vpop.f32.mrf.mxu0
    %v141 = vadd.f32 0.0, %v140
    %v142 = vpop.f32.mrf.mxu0
    %143 = vmatprep.mubr.bf16.mxu0 0
    %144 = vmatmul.mubr.bf16.gmra.mxu0 %v69
    %v145 = vpop.f32.mrf.mxu0
    %v146 = vadd.f32 0.0, %v145
    %v147 = vpop.f32.mrf.mxu0
    %v148 = vpop.f32.mrf.mxu0
    %v149 = vadd.f32 0.0, %v148
    %v150 = vpop.f32.mrf.mxu0
    %151 = vdwg.mxu0
    %152 = vst [vmem:[#allocation2] sm:$0xff] %v106
    %153 = vst [vmem:[#allocation2 + $0x8] sm:$0xff] %v109
    %154 = vst [vmem:[#allocation2 + $0x10] sm:$0xff] %v114
    %155 = vst [vmem:[#allocation2 + $0x18] sm:$0xff] %v117
    %156 = vst [vmem:[#allocation2 + $0x20] sm:$0xff] %v122
    %157 = vst [vmem:[#allocation2 + $0x28] sm:$0xff] %v125
    %158 = vst [vmem:[#allocation2 + $0x30] sm:$0xff] %v130
    %159 = vst [vmem:[#allocation2 + $0x38] sm:$0xff] %v133
    %160 = vst [vmem:[#allocation4] sm:$0xff] %v138
    %161 = vst [vmem:[#allocation4 + $0x8] sm:$0xff] %v141
    %162 = vst [vmem:[#allocation4 + $0x10] sm:$0xff] %v146
    %163 = vst [vmem:[#allocation4 + $0x18] sm:$0xff] %v149
    // Predicated region
    $region14: #{tpu_custom_call.1} parent=1 // pred_check
      _
    $region15: #{tpu_custom_call.1} parent=1 // pred_check_branch
      %165 = sbr.rel (0) target = $region17
    $region16: #{tpu_custom_call.1} parent=1 // pred_region
      %s167 = ssub.s32 1024, 1024
      %168 = vsyncadd [#allocation3], %s167
      %s169 = sshll.u32 [#allocation2], 4
      %s170 = int_to_ptr.vmem [resolvable:$true] %s169
      %175 = dma.vmem_to_hbm [thread:$0]  %s170, 1024, %s3, [#allocation3], 128, 128, 8
    $region17: #{tpu_custom_call.1} parent=1 // pred_fallthru
      _
    // Predicated region
    $region18: #{tpu_custom_call.1} parent=1 // pred_check
      _
    $region19: #{tpu_custom_call.1} parent=1 // pred_check_branch
      %177 = sbr.rel (0) target = $region21
    $region20: #{tpu_custom_call.1} parent=1 // pred_region
      %s179 = ssub.s32 512, 512
      %180 = vsyncadd [#allocation5], %s179
      %s181 = sshll.u32 [#allocation4], 4
      %s182 = int_to_ptr.vmem [resolvable:$true] %s181
      %187 = dma.vmem_to_hbm [thread:$0]  %s182, 512, %s4, [#allocation5], 128, 128, 8
    $region21: #{tpu_custom_call.1} parent=1 // pred_fallthru
      _
    // Predicated region
    $region22: #{tpu_custom_call.1} parent=1 // pred_check
      _
    $region23: #{tpu_custom_call.1} parent=1 // pred_check_branch
      %189 = sbr.rel (0) target = $region25
    $region24: #{tpu_custom_call.1} parent=1 // pred_region
      %190 = dma.done [#allocation3], 1024
    $region25: #{tpu_custom_call.1} parent=1 // pred_fallthru
      _
    // Predicated region
    $region26: #{tpu_custom_call.1} parent=1 // pred_check
      _
    $region27: #{tpu_custom_call.1} parent=1 // pred_check_branch
      %192 = sbr.rel (0) target = $region29
    $region28: #{tpu_custom_call.1} parent=1 // pred_region
      %193 = dma.done [#allocation5], 512
    $region29: #{tpu_custom_call.1} parent=1 // pred_fallthru
      _
    %194 = vsyncpa [#allocation3], 1
    %195 = vsyncpa [#allocation5], 1

</llo_original>
